<compile_context>
chip_gen: v5e
topology: v5e:2x2
jax: 0.10.0
libtpu: 0.0.40
codegen_flags: <defaults>
</compile_context>

<pallas_src>
import jax
import jax.numpy as jnp
from jax.experimental import pallas as pl
from jax.experimental.pallas import tpu as pltpu


def gnn_adj_kernel(adj_ref, wfl_ref, o_ref):
    # adj_ref: (bt, Rt, N)  chunk of adjacency rows (all channels flattened)
    # wfl_ref: (bt, Rt, 1)  per-row weight = W.sum(0)[c] * node_flags[n]**2
    # o_ref:   (bt, 1, 1)   per-graph adjacency term, VMEM-resident across k
    @pl.when(pl.program_id(1) == 0)
    def _():
        o_ref[...] = jnp.zeros_like(o_ref)

    adj = adj_ref[...].astype(jnp.float32)           # upcast if streamed narrow
    deg = jnp.sum(adj, axis=-1, keepdims=True)       # (bt, Rt, 1) row degrees
    o_ref[...] += jnp.sum(deg * wfl_ref[...], axis=1, keepdims=True)   # (bt, 1, 1)


def _round_up(a, m):
    return (a + m - 1) // m * m


def gnn_forward(x, adjs, node_flags, W, b, max_layers_num, *,
                adj_stream_dtype=None,
                target_tile_bytes=4 << 20,
                vmem_cap_bytes=48 << 20):
    """Pallas implementation of GraphNeuralNetwork.forward."""
    B, N, F_in = x.shape
    C = adjs.shape[1]
    f32 = jnp.float32
    stream_dtype = (jnp.dtype(adj_stream_dtype) if adj_stream_dtype is not None
                    else jnp.dtype(f32))
    itemsize = stream_dtype.itemsize

    # ---- tiny wrapper-side math (O(B*N*F) / O(params)), plain XLA ----------
    fl2 = node_flags.astype(f32) ** 2            # flags applied twice (preprocess+readout)
    wsum = jnp.sum(W.astype(f32), axis=0)        # (C,) column sums of Linear(C, 2C)
    bsum = jnp.sum(b.astype(f32))
    x_term = (jnp.einsum('bnf,bn->b', x.astype(f32), fl2)
              + bsum * jnp.sum(fl2, axis=-1))                          # (B,)

    # per-row weight for the adjacency term, row index r = c*N + n
    w_fl = (wsum[None, :, None] * fl2[:, None, :]).reshape(B, C * N, 1)

    # adjacency viewed as (B, C*N, N): contiguous axis merge, free reshape
    adj3 = adjs.astype(stream_dtype).reshape(B, C * N, N)

    # ---- tiling -------------------------------------------------------------
    R = C * N
    per_b_bytes = R * N * itemsize
    if per_b_bytes <= target_tile_bytes:
        Rt = R                                    # all rows of a graph per step
    else:
        Rt = max(8, (target_tile_bytes // (N * itemsize)) // 8 * 8)
        Rt = min(Rt, _round_up(R, 8))
    R_pad = R if Rt == R else _round_up(R, Rt)
    num_row_steps = R_pad // Rt

    per_step_b_bytes = max(Rt * N * itemsize, 1)
    bt = max(1, min(B, target_tile_bytes // per_step_b_bytes))
    # keep enough batch grid steps for pipelining / both v7x TensorCores
    min_b_steps = (min(B, 4) if num_row_steps < 4 else 2) if B > 1 else 1
    bt = max(1, min(bt, pl.cdiv(B, min_b_steps)))
    num_b_steps = pl.cdiv(B, bt)
    if num_b_steps > 1 and num_b_steps % 2 == 1:
        num_b_steps += 1                          # even split across 2 TensorCores
    B_pad = num_b_steps * bt

    # padded graphs / rows are all-zero -> contribute exactly 0
    adj3 = jnp.pad(adj3, ((0, B_pad - B), (0, R_pad - R), (0, 0)))
    w_fl = jnp.pad(w_fl, ((0, B_pad - B), (0, R_pad - R), (0, 0)))

    # ---- explicit VMEM budget (buffered tile footprint + headroom) ---------
    lane, sub = 128, 8
    adj_bufs = 3 if num_row_steps >= 8 else 2     # deeper pipeline on long reductions
    adj_tile_vmem = bt * _round_up(Rt, sub) * _round_up(N, lane) * itemsize
    wfl_tile_vmem = bt * _round_up(Rt, sub) * lane * 4
    out_tile_vmem = bt * sub * lane * 4
    vmem_limit = int(min(max(adj_bufs * adj_tile_vmem
                             + 2 * (wfl_tile_vmem + out_tile_vmem)
                             + (2 << 20), 8 << 20), vmem_cap_bytes))

    cost = pl.CostEstimate(
        flops=2 * B_pad * R_pad * N + 4 * B_pad * R_pad,
        transcendentals=0,
        bytes_accessed=int(B_pad * R_pad * N * itemsize + B_pad * R_pad * 4 + B_pad * 4),
    )

    if adj_bufs == 3:
        adj_spec = pl.BlockSpec((bt, Rt, N), lambda i, k: (i, k, 0),
                                pipeline_mode=pl.Buffered(3))
    else:
        adj_spec = pl.BlockSpec((bt, Rt, N), lambda i, k: (i, k, 0))

    adj_term = pl.pallas_call(
        gnn_adj_kernel,
        out_shape=jax.ShapeDtypeStruct((B_pad, 1, 1), f32),
        grid_spec=pltpu.PrefetchScalarGridSpec(
            num_scalar_prefetch=0,
            grid=(num_b_steps, num_row_steps),
            in_specs=[
                adj_spec,
                pl.BlockSpec((bt, Rt, 1), lambda i, k: (i, k, 0)),
            ],
            out_specs=pl.BlockSpec((bt, 1, 1), lambda i, k: (i, 0, 0)),
        ),
        compiler_params=pltpu.CompilerParams(
            dimension_semantics=("parallel", "arbitrary"),
            vmem_limit_bytes=vmem_limit,
        ),
        cost_estimate=cost,
    )(adj3, w_fl)

    # The max_layers_num aggregate/combine loop is the identity in the
    # reference module, so there is nothing to compute for it.
    # TODO(synk): check_adjs_symmetry depends on an undefined global flag
    # (do_check_adjs_symmetry) in the reference; not replicated (the result
    # does not depend on symmetry anyway).
    out = adj_term.reshape(B_pad)[:B] + x_term
    return jnp.squeeze(out)      # matches torch `.squeeze()` in _readout


def gnn_ref(x, adjs, node_flags, W, b):
    """Plain-JAX reference mirroring the PyTorch forward."""
    deg = adjs.sum(-1)                              # (B, C, N)
    deg = jnp.transpose(deg, (0, 2, 1))             # (B, N, C)
    proj = deg @ W.T + b                            # (B, N, 2C)
    xc = jnp.concatenate([x, proj], axis=-1)        # (B, N, F_in + 2C)
    xc = xc * node_flags[..., None]                 # _graph_preprocess
    xc = xc * node_flags[..., None]                 # _readout mask
    return jnp.squeeze(xc.reshape(xc.shape[0], -1).sum(-1))


if __name__ == "__main__":
    key = jax.random.PRNGKey(0)
    B, N, C, F_in = 2, 16, 4, 8          # channel_num = C = 4
    max_layers_num = 3

    k1, k2, k3, k4, k5 = jax.random.split(key, 5)
    x = jax.random.normal(k1, (B, N, F_in), dtype=jnp.float32)
    a = jax.random.normal(k2, (B, C, N, N), dtype=jnp.float32)
    adjs = 0.5 * (a + jnp.transpose(a, (0, 1, 3, 2)))        # symmetric adjacency
    node_flags = (jax.random.uniform(k3, (B, N)) > 0.25).astype(jnp.float32)
    # deterministic "parameters" for nn.Linear(channel_num, 2*channel_num)
    W = jax.random.normal(k4, (2 * C, C), dtype=jnp.float32) * 0.1
    bias = jax.random.normal(k5, (2 * C,), dtype=jnp.float32) * 0.1

    out = gnn_forward(x, adjs, node_flags, W, bias, max_layers_num)
    out = jax.block_until_ready(out)

    ref = gnn_ref(x, adjs, node_flags, W, bias)
    assert out.shape == (B,), out.shape
    assert jnp.allclose(out, ref, atol=1e-4, rtol=1e-4), (out, ref)
    print("KERNEL_OK")
</pallas_src>

<mosaic_0001>
module attributes {stable_mosaic.version = 11 : i64} {
  func.func @gnn_adj_kernel(%arg0: i32, %arg1: i32, %arg2: memref<1x64x16xf32, #tpu.memory_space<vmem>>, %arg3: memref<1x64x1xf32, #tpu.memory_space<vmem>>, %arg4: memref<1x1x1xf32, #tpu.memory_space<vmem>>) attributes {dimension_semantics = [#tpu.dimension_semantics<parallel>, #tpu.dimension_semantics<arbitrary>], iteration_bounds = array<i64: 2, 1>, scalar_prefetch = 0 : i64, scratch_operands = 0 : i64, tpu.core_type = #tpu.core_type<tc>, window_params = [{transform_indices = @transform_0, window_bounds = array<i64: 1, 64, 16>}, {transform_indices = @transform_1, window_bounds = array<i64: 1, 64, 1>}, {transform_indices = @transform_2, window_bounds = array<i64: 1, 1, 1>}]} {
    %c0_i32 = arith.constant 0 : i32
    %0 = arith.cmpi eq, %arg1, %c0_i32 : i32
    %1 = arith.extui %0 : i1 to i32
    %c0_i32_0 = arith.constant 0 : i32
    %2 = arith.cmpi ne, %1, %c0_i32_0 : i32
    scf.if %2 {
      %cst_13 = arith.constant 0.000000e+00 : f32
      %13 = vector.broadcast %cst_13 : f32 to vector<1x1x1xf32>
      %c0_14 = arith.constant 0 : index
      %c0_15 = arith.constant 0 : index
      %c0_16 = arith.constant 0 : index
      %14 = vector.load %arg4[%c0_14, %c0_15, %c0_16] : memref<1x1x1xf32, #tpu.memory_space<vmem>>, vector<1x1x1xf32>
      tpu.vector_store %arg4[%c0_14, %c0_15, %c0_16], %13 {strides = array<i32>} : memref<1x1x1xf32, #tpu.memory_space<vmem>>, vector<1x1x1xf32>,
    } else {
    }
    %c0 = arith.constant 0 : index
    %c0_1 = arith.constant 0 : index
    %c0_2 = arith.constant 0 : index
    %3 = vector.load %arg2[%c0, %c0_1, %c0_2] : memref<1x64x16xf32, #tpu.memory_space<vmem>>, vector<1x64x16xf32>
    %cst = arith.constant dense<0.000000e+00> : vector<1x64xf32>
    %4 = vector.multi_reduction <add>, %3, %cst [2] : vector<1x64x16xf32> to vector<1x64xf32>
    %5 = vector.shape_cast %4 : vector<1x64xf32> to vector<1x64x1xf32>
    %c0_3 = arith.constant 0 : index
    %c0_4 = arith.constant 0 : index
    %c0_5 = arith.constant 0 : index
    %6 = vector.load %arg4[%c0_3, %c0_4, %c0_5] : memref<1x1x1xf32, #tpu.memory_space<vmem>>, vector<1x1x1xf32>
    %c0_6 = arith.constant 0 : index
    %c0_7 = arith.constant 0 : index
    %c0_8 = arith.constant 0 : index
    %7 = vector.load %arg3[%c0_6, %c0_7, %c0_8] : memref<1x64x1xf32, #tpu.memory_space<vmem>>, vector<1x64x1xf32>
    %8 = arith.mulf %5, %7 : vector<1x64x1xf32>
    %cst_9 = arith.constant dense<0.000000e+00> : vector<1x1xf32>
    %9 = vector.multi_reduction <add>, %8, %cst_9 [1] : vector<1x64x1xf32> to vector<1x1xf32>
    %10 = vector.shape_cast %9 : vector<1x1xf32> to vector<1x1x1xf32>
    %11 = arith.addf %6, %10 : vector<1x1x1xf32>
    %c0_10 = arith.constant 0 : index
    %c0_11 = arith.constant 0 : index
    %c0_12 = arith.constant 0 : index
    %12 = vector.load %arg4[%c0_10, %c0_11, %c0_12] : memref<1x1x1xf32, #tpu.memory_space<vmem>>, vector<1x1x1xf32>
    tpu.vector_store %arg4[%c0_10, %c0_11, %c0_12], %11 {strides = array<i32>} : memref<1x1x1xf32, #tpu.memory_space<vmem>>, vector<1x1x1xf32>,
    return
  }
  func.func @transform_0(%arg0: i32, %arg1: i32) -> (i32, i32, i32) {
    %c0_i32 = arith.constant 0 : i32
    %c0_i32_0 = arith.constant 0 : i32
    return %arg0, %arg1, %c0_i32 : i32, i32, i32
  }
  func.func @transform_1(%arg0: i32, %arg1: i32) -> (i32, i32, i32) {
    %c0_i32 = arith.constant 0 : i32
    %c0_i32_0 = arith.constant 0 : i32
    return %arg0, %arg1, %c0_i32 : i32, i32, i32
  }
  func.func @transform_2(%arg0: i32, %arg1: i32) -> (i32, i32, i32) {
    %c0_i32 = arith.constant 0 : i32
    %c0_i32_0 = arith.constant 0 : i32
    %c0_i32_1 = arith.constant 0 : i32
    return %arg0, %c0_i32, %c0_i32_0 : i32, i32, i32
  }
}

</mosaic_0001>

<llo_original>
// kernel: tpu_custom_call.1
$region0: #{tpu_custom_call.1}
  #allocation0 [shape = 'u32[]', space=smem, size = 0x4, offset = 0x4, fixed_abs, tag = 'smem constant byte address 0x4 - core index']
  #allocation1 [shape = 'u32[72,128]{1,0:T(1,128)}', space=vmem, size = 0x9000, scoped, tag = 'internal scratch']
  %s0 = inlined_call_operand.vmem [shape: f32[2,64,16], index: 0, kind: input, shape index: {}]
  %s1 = inlined_call_operand.vmem [shape: f32[2,64,1], index: 1, kind: input, shape index: {}]
  %s2 = inlined_call_operand.vmem [shape: f32[2,1,1], index: 2, kind: output, shape index: {}]
  %s3 = sld [smem:[#allocation0]]
  $region45: #{tpu_custom_call.1} parent=0
    _
  %s5 = ssub.s32 1, %s3
  %s6 = scalar_select 0, %s5, %s3
  loop: start=0, step=1, limit=4
  $region2: #{tpu_custom_call.1} parent=0 // loop_pre_header
    _
  $region3: #{tpu_custom_call.1} parent=0 // loop_header
    %s8 = sphi 0, %s12
    %p9 = scmp.ge.s32.totalorder %s8, 4
    %s15 = sphi 0, %s27
    %s16 = sphi 0, %s23
    %s17 = sphi 0, %s15
    %s18 = sphi 0, %s16
    %s19 = sphi 0, %s17
    %s20 = sphi 0, %s18
    %s32 = sphi 0, %s34
    %s35 = sphi 0, %s32
    %s36 = sphi 0, %s35
    %s52 = sphi 0, %s36
    %s60 = sphi 0, %s62
    %s63 = sphi 0, %s60
    %s64 = sphi 0, %s63
    %s80 = sphi 0, %s64
    %s86 = sphi 0, %s88
    %s89 = sphi 0, %s86
    %s90 = sphi 0, %s89
    %s106 = sphi 0, %s90
  $region4: #{tpu_custom_call.1} parent=0 // loop_header_branch
    %11 = sbr.rel (%p9) target = $region8
  $region5: #{tpu_custom_call.1} parent=0 // loop_body
    %s13 = ssub.s32 %s8, 1
    %s14 = ssub.s32 %s8, 2
    %s21 = sadd.s32 1, %s16
    %p22 = scmp.ge.s32.totalorder %s21, 1
    %s23 = scalar_select %p22, 0, %s21
    %s24 = sadd.s32 1, %s15
    %s25 = scalar_select %p22, %s24, %s15
    %p26 = scmp.ge.s32.totalorder %s25, 2
    %s27 = scalar_select %p26, 0, %s25
    %s28 = ssub.s32 %s15, %s27
    %s29 = ssub.s32 %s16, %s23
    %s30 = sor.u32 %s28, %s29
    %p31 = scmp.eq.s32.totalorder %s30, 0
    %s33 = sadd.s32 %s32, 1
    %s34 = scalar_select %p31, %s32, %s33
    %p37 = pneg %p31
    %p38 = scmp.eq.s32.totalorder %s8, 1
    %p39 = por %p37, %p38
    %p40 = scmp.ne.s32.totalorder %s32, %s35
    %p41 = scmp.eq.s32.totalorder %s8, 0
    %p42 = por %p40, %p41
    %p43 = scmp.ne.s32.totalorder %s32, %s35
    %p44 = scmp.eq.s32.totalorder %s13, 1
    %p45 = por %p43, %p44
    %p46 = scmp.ne.s32.totalorder %s35, %s36
    %p47 = scmp.eq.s32.totalorder %s13, 0
    %p48 = por %p46, %p47
    %p49 = scmp.ne.s32.totalorder %s35, %s36
    %p50 = scmp.eq.s32.totalorder %s14, 1
    %p51 = por %p49, %p50
    %p53 = scmp.ne.s32.totalorder %s36, %s52
    %p54 = scmp.eq.s32.totalorder %s14, 0
    %p55 = por %p53, %p54
    %s56 = ssub.s32 %s15, %s27
    %s57 = ssub.s32 %s16, %s23
    %s58 = sor.u32 %s56, %s57
    %p59 = scmp.eq.s32.totalorder %s58, 0
    %s61 = sadd.s32 %s60, 1
    %s62 = scalar_select %p59, %s60, %s61
    %p65 = pneg %p59
    %p66 = scmp.eq.s32.totalorder %s8, 1
    %p67 = por %p65, %p66
    %p68 = scmp.ne.s32.totalorder %s60, %s63
    %p69 = scmp.eq.s32.totalorder %s8, 0
    %p70 = por %p68, %p69
    %p71 = scmp.ne.s32.totalorder %s60, %s63
    %p72 = scmp.eq.s32.totalorder %s13, 1
    %p73 = por %p71, %p72
    %p74 = scmp.ne.s32.totalorder %s63, %s64
    %p75 = scmp.eq.s32.totalorder %s13, 0
    %p76 = por %p74, %p75
    %p77 = scmp.ne.s32.totalorder %s63, %s64
    %p78 = scmp.eq.s32.totalorder %s14, 1
    %p79 = por %p77, %p78
    %p81 = scmp.ne.s32.totalorder %s64, %s80
    %p82 = scmp.eq.s32.totalorder %s14, 0
    %p83 = por %p81, %p82
    %s84 = ssub.s32 %s15, %s27
    %p85 = scmp.eq.s32.totalorder %s84, 0
    %s87 = sadd.s32 %s86, 1
    %s88 = scalar_select %p85, %s86, %s87
    %p91 = pneg %p85
    %p92 = scmp.eq.s32.totalorder %s8, 1
    %p93 = por %p91, %p92
    %p94 = scmp.ne.s32.totalorder %s86, %s89
    %p95 = scmp.eq.s32.totalorder %s8, 0
    %p96 = por %p94, %p95
    %p97 = scmp.ne.s32.totalorder %s86, %s89
    %p98 = scmp.eq.s32.totalorder %s13, 1
    %p99 = por %p97, %p98
    %p100 = scmp.ne.s32.totalorder %s89, %s90
    %p101 = scmp.eq.s32.totalorder %s13, 0
    %p102 = por %p100, %p101
    %p103 = scmp.ne.s32.totalorder %s89, %s90
    %p104 = scmp.eq.s32.totalorder %s14, 1
    %p105 = por %p103, %p104
    %p107 = scmp.ne.s32.totalorder %s90, %s106
    %p108 = scmp.eq.s32.totalorder %s14, 0
    %p109 = por %p107, %p108
    %p110 = scmp.le.s32.totalorder 1, %s8
    %p111 = scmp.lt.s32.totalorder %s8, 3
    %p112 = pnand %p110, %p111
    %p113 = pneg %p112
    // Predicated region
    $region9: #{tpu_custom_call.1} parent=5 // pred_check
      _
    $region10: #{tpu_custom_call.1} parent=5 // pred_check_branch
      %115 = sbr.rel (%p112) target = $region12
    $region11: #{tpu_custom_call.1} parent=5 // pred_region
      %s116 = ssub.s32 %s8, 1
    $region12: #{tpu_custom_call.1} parent=5 // pred_fallthru
      _
    %p117 = scmp.lt.s32.totalorder %s8, 2
    // Predicated region
    $region13: #{tpu_custom_call.1} parent=5 // pred_check
      %p118 = pneg %p117
    $region14: #{tpu_custom_call.1} parent=5 // pred_check_branch
      %120 = sbr.rel (%p118) target = $region16
    $region15: #{tpu_custom_call.1} parent=5 // pred_region
      // Predicated region
      $region17: #{tpu_custom_call.1} parent=15 // pred_check
        %p121 = pneg %p42
      $region18: #{tpu_custom_call.1} parent=15 // pred_check_branch
        %123 = sbr.rel (%p121) target = $region20
      $region19: #{tpu_custom_call.1} parent=15 // pred_region
        %s124 = smul.u32 8, %s16
        %p125 = scmp.lt.s32.totalorder %s15, 1
        %s126 = scalar_select %p125, %s15, 1
        %p127 = scmp.lt.s32.totalorder %s124, 7
        %s128 = scalar_select %p127, %s124, 7
        %s129 = smul.addr %s126, 8
        %s130 = sadd.s32 %s128, %s129
        %s131 = smul.addr %s130, 8
        %s132 = scalar_lea.vmem %s0, %s131
        %s133 = smul.u32 8, %s16
      $region20: #{tpu_custom_call.1} parent=15 // pred_fallthru
        _
      // Predicated region
      $region21: #{tpu_custom_call.1} parent=15 // pred_check
        %p134 = pneg %p70
      $region22: #{tpu_custom_call.1} parent=15 // pred_check_branch
        %136 = sbr.rel (%p134) target = $region24
      $region23: #{tpu_custom_call.1} parent=15 // pred_region
        %s137 = smul.u32 8, %s16
        %p138 = scmp.lt.s32.totalorder %s15, 1
        %s139 = scalar_select %p138, %s15, 1
        %p140 = scmp.lt.s32.totalorder %s137, 7
        %s141 = scalar_select %p140, %s137, 7
        %s142 = smul.addr %s139, 8
        %s143 = sadd.s32 %s141, %s142
        %s144 = smul.addr %s143, 8
        %s145 = scalar_lea.vmem %s1, %s144
        %s146 = smul.u32 8, %s16
      $region24: #{tpu_custom_call.1} parent=15 // pred_fallthru
        _
    $region16: #{tpu_custom_call.1} parent=5 // pred_fallthru
      _
    %p147 = scmp.le.s32.totalorder 1, %s8
    %p148 = scmp.lt.s32.totalorder %s8, 3
    %p149 = pnand %p147, %p148
    %p150 = pneg %p149
    // Predicated region
    $region25: #{tpu_custom_call.1} parent=5 // pred_check
      _
    $region26: #{tpu_custom_call.1} parent=5 // pred_check_branch
      %152 = sbr.rel (%p149) target = $region28
    $region27: #{tpu_custom_call.1} parent=5 // pred_region
      %s153 = ssub.s32 %s8, 1
      %s154 = smul.u32 8, %s18
      %p155 = scmp.lt.s32.totalorder %s17, 1
      %s156 = scalar_select %p155, %s17, 1
      %p157 = scmp.lt.s32.totalorder %s154, 7
      %s158 = scalar_select %p157, %s154, 7
      %s159 = smul.addr %s156, 8
      %s160 = sadd.s32 %s158, %s159
      %s161 = smul.addr %s160, 8
      %s162 = scalar_lea.vmem %s0, %s161
      %p163 = pneg %p48
      %p164 = pneg %p45
      %s165 = smul.u32 8, %s18
      %p166 = scmp.lt.s32.totalorder %s17, 1
      %s167 = scalar_select %p166, %s17, 1
      %p168 = scmp.lt.s32.totalorder %s165, 7
      %s169 = scalar_select %p168, %s165, 7
      %s170 = smul.addr %s167, 8
      %s171 = sadd.s32 %s169, %s170
      %s172 = smul.addr %s171, 8
      %s173 = scalar_lea.vmem %s1, %s172
      %p174 = pneg %p76
      %p175 = pneg %p73
      %p176 = pneg %p102
      %p177 = pneg %p99
      %p178 = scmp.lt.s32.totalorder %s17, 1
      %s179 = scalar_select %p178, %s17, 1
      %s180 = scalar_lea.vmem %s2, %s179
      %s181 = smul.u32 8, %s18
      %p182 = scmp.lt.s32.totalorder %s17, 1
      %s183 = scalar_select %p182, %s17, 1
      %p184 = scmp.lt.s32.totalorder %s181, 7
      %s185 = scalar_select %p184, %s181, 7
      %s186 = smul.addr %s183, 8
      %s187 = sadd.s32 %s185, %s186
      %s188 = smul.addr %s187, 8
      %s189 = scalar_lea.vmem %s0, %s188
      %s190 = smul.u32 8, %s18
      %s191 = smul.u32 8, %s18
      %p192 = scmp.lt.s32.totalorder %s17, 1
      %s193 = scalar_select %p192, %s17, 1
      %p194 = scmp.lt.s32.totalorder %s191, 7
      %s195 = scalar_select %p194, %s191, 7
      %s196 = smul.addr %s193, 8
      %s197 = sadd.s32 %s195, %s196
      %s198 = smul.addr %s197, 8
      %s199 = scalar_lea.vmem %s1, %s198
      %s200 = smul.u32 8, %s18
      %p201 = scmp.lt.s32.totalorder %s17, 1
      %s202 = scalar_select %p201, %s17, 1
      %s203 = scalar_lea.vmem %s2, %s202
      %p204 = scmp.eq.s32.totalorder %s18, 0
      // Predicated region
      $region29: #{tpu_custom_call.1} parent=27 // pred_check
        %p205 = pneg %p204
      $region30: #{tpu_custom_call.1} parent=27 // pred_check_branch
        %207 = sbr.rel (%p205) target = $region32
      $region31: #{tpu_custom_call.1} parent=27 // pred_region
        %vm208 = vcmask 0
        %209 = vst.msk [vmem:[%s203] sm:$0x1] %vm208, 0.0
      $region32: #{tpu_custom_call.1} parent=27 // pred_fallthru
        _
      %v210 = vld [vmem:[%s189] sm:$0xff]
      %v211 = vld [vmem:[%s189 + $0x8] sm:$0xff]
      %v212 = vld [vmem:[%s189 + $0x10] sm:$0xff]
      %v213 = vld [vmem:[%s189 + $0x18] sm:$0xff]
      %v214 = vld [vmem:[%s189 + $0x20] sm:$0xff]
      %v215 = vld [vmem:[%s189 + $0x28] sm:$0xff]
      %v216 = vld [vmem:[%s189 + $0x30] sm:$0xff]
      %v217 = vld [vmem:[%s189 + $0x38] sm:$0xff]
      %vm218 = vcmask 130048
      %v219 = vsel %vm218, %v210, 0.0
      %220 = vadd.xlane.f32.xlu0 %v219
      %v221 = vpop.xlane.xlu0 %220
      %v222 = vsel %vm218, %v211, 0.0
      %223 = vadd.xlane.f32.xlu0 %v222
      %v224 = vpop.xlane.xlu0 %223
      %v225 = vsel %vm218, %v212, 0.0
      %226 = vadd.xlane.f32.xlu0 %v225
      %v227 = vpop.xlane.xlu0 %226
      %v228 = vsel %vm218, %v213, 0.0
      %229 = vadd.xlane.f32.xlu0 %v228
      %v230 = vpop.xlane.xlu0 %229
      %v231 = vsel %vm218, %v214, 0.0
      %232 = vadd.xlane.f32.xlu0 %v231
      %v233 = vpop.xlane.xlu0 %232
      %v234 = vsel %vm218, %v215, 0.0
      %235 = vadd.xlane.f32.xlu0 %v234
      %v236 = vpop.xlane.xlu0 %235
      %v237 = vsel %vm218, %v216, 0.0
      %238 = vadd.xlane.f32.xlu0 %v237
      %v239 = vpop.xlane.xlu0 %238
      %v240 = vsel %vm218, %v217, 0.0
      %241 = vadd.xlane.f32.xlu0 %v240
      %v242 = vpop.xlane.xlu0 %241
      %v243 = vld [vmem:[%s203] sm:$0x1]
      %v244 = vld [vmem:[%s199] sm:$0xff]
      %v245 = vld [vmem:[%s199 + $0x8] sm:$0xff]
      %v246 = vld [vmem:[%s199 + $0x10] sm:$0xff]
      %v247 = vld [vmem:[%s199 + $0x18] sm:$0xff]
      %v248 = vld [vmem:[%s199 + $0x20] sm:$0xff]
      %v249 = vld [vmem:[%s199 + $0x28] sm:$0xff]
      %v250 = vld [vmem:[%s199 + $0x30] sm:$0xff]
      %v251 = vld [vmem:[%s199 + $0x38] sm:$0xff]
      %v252 = vmul.f32 %v221, %v244
      %v253 = vmul.f32 %v224, %v245
      %v254 = vmul.f32 %v227, %v246
      %v255 = vmul.f32 %v230, %v247
      %v256 = vmul.f32 %v233, %v248
      %v257 = vmul.f32 %v236, %v249
      %v258 = vmul.f32 %v239, %v250
      %v259 = vmul.f32 %v242, %v251
      %vm260 = vcmask 7168
      %v261 = vsel %vm260, %v252, 0.0
      %v262 = vsel %vm260, %v253, 0.0
      %v263 = vadd.f32 %v261, %v262
      %v264 = vsel %vm260, %v254, 0.0
      %v265 = vadd.f32 %v263, %v264
      %v266 = vsel %vm260, %v255, 0.0
      %v267 = vadd.f32 %v265, %v266
      %v268 = vsel %vm260, %v256, 0.0
      %v269 = vadd.f32 %v267, %v268
      %v270 = vsel %vm260, %v257, 0.0
      %v271 = vadd.f32 %v269, %v270
      %v272 = vsel %vm260, %v258, 0.0
      %v273 = vadd.f32 %v271, %v272
      %v274 = vsel %vm260, %v259, 0.0
      %v275 = vadd.f32 %v273, %v274
      %v276 = vrot.slane %v275, 4
      %v277 = vadd.f32 %v275, %v276
      %v278 = vrot.slane %v277, 2
      %v279 = vadd.f32 %v277, %v278
      %v280 = vrot.slane %v279, 1
      %v281 = vadd.f32 %v279, %v280
      %v282 = vadd.f32 %v243, %v281
      %vm283 = vcmask 0
      %284 = vst.msk [vmem:[%s203] sm:$0x1] %vm283, %v282
      %p285 = scmp.lt.s32.totalorder %s17, 1
      %s286 = scalar_select %p285, %s17, 1
      %s287 = scalar_lea.vmem %s2, %s286
      // Predicated region
      $region33: #{tpu_custom_call.1} parent=27 // pred_check
        %p288 = pneg %p99
      $region34: #{tpu_custom_call.1} parent=27 // pred_check_branch
        %290 = sbr.rel (%p288) target = $region36
      $region35: #{tpu_custom_call.1} parent=27 // pred_region
        _
      $region36: #{tpu_custom_call.1} parent=27 // pred_fallthru
        _
    $region28: #{tpu_custom_call.1} parent=5 // pred_fallthru
      _
    %p291 = scmp.le.s32.totalorder 2, %s8
    // Predicated region
    $region37: #{tpu_custom_call.1} parent=5 // pred_check
      %p292 = pneg %p291
    $region38: #{tpu_custom_call.1} parent=5 // pred_check_branch
      %294 = sbr.rel (%p292) target = $region40
    $region39: #{tpu_custom_call.1} parent=5 // pred_region
      %s295 = ssub.s32 %s8, 2
      // Predicated region
      $region41: #{tpu_custom_call.1} parent=39 // pred_check
        %p296 = pneg %p105
      $region42: #{tpu_custom_call.1} parent=39 // pred_check_branch
        %298 = sbr.rel (%p296) target = $region44
      $region43: #{tpu_custom_call.1} parent=39 // pred_region
        %p299 = scmp.lt.s32.totalorder %s19, 1
        %s300 = scalar_select %p299, %s19, 1
        %s301 = scalar_lea.vmem %s2, %s300
      $region44: #{tpu_custom_call.1} parent=39 // pred_fallthru
        _
    $region40: #{tpu_custom_call.1} parent=5 // pred_fallthru
      _
  $region6: #{tpu_custom_call.1} parent=0 // loop_footer
    %s12 = sadd.s32 1, %s8
  $region7: #{tpu_custom_call.1} parent=0 // loop_footer_branch
    %7 = sbr.rel target = $region3
  $region8: #{tpu_custom_call.1} parent=0 // loop_exit
    _

</llo_original>
